<compile_context>
chip_gen: v7x
topology: tpu7x:2x2x1
jax: 0.10.0
libtpu: 0.0.40
codegen_flags: <defaults>
</compile_context>

<pallas_src>
import jax
import jax.numpy as jnp
from jax import lax
from jax.experimental import pallas as pl
from jax.experimental.pallas import tpu as pltpu

PAD = 128  # lane width / padded channel dim for layers 1..L-1 and the output


def _round_up(x, m):
    return ((x + m - 1) // m) * m


# ----------------------------------------------------------------------------
# Plain-JAX glue: sampling / grouping front end (mirrors the PyTorch code).
# ----------------------------------------------------------------------------
def get_dists(points1, points2):
    # points1: (B, M, C), points2: (B, N, C) -> (B, M, N)
    d = (jnp.sum(points1 ** 2, axis=-1)[:, :, None]
         + jnp.sum(points2 ** 2, axis=-1)[:, None, :])
    d = d - 2.0 * jnp.matmul(points1, jnp.transpose(points2, (0, 2, 1)))
    d = jnp.where(d < 0, jnp.full_like(d, 1e-7), d)
    return jnp.sqrt(d).astype(jnp.float32)


def fps(xyz, M, key):
    # Deterministic initial indices via jax.random (replaces torch.randint).
    B, N, _ = xyz.shape
    dists0 = jnp.full((B, N), 1e5, dtype=jnp.float32)
    inds0 = jax.random.randint(key, (B,), 0, N, dtype=jnp.int32)
    batch = jnp.arange(B)
    centroids0 = jnp.zeros((B, M), dtype=jnp.int32)

    def body(i, carry):
        centroids, dists, inds = carry
        centroids = centroids.at[:, i].set(inds)
        cur_point = xyz[batch, inds, :]                             # (B, 3)
        cur_dist = get_dists(cur_point[:, None, :], xyz)[:, 0, :]   # (B, N)
        dists = jnp.minimum(dists, cur_dist)
        inds = jnp.argmax(dists, axis=1).astype(jnp.int32)
        return centroids, dists, inds

    centroids, _, _ = lax.fori_loop(0, M, body, (centroids0, dists0, inds0))
    return centroids                                                # (B, M)


def ball_query(xyz, new_xyz, radius, K):
    B, N, _ = xyz.shape
    M = new_xyz.shape[1]
    grouped_inds = jnp.broadcast_to(jnp.arange(N, dtype=jnp.int32), (B, M, N))
    dists = get_dists(new_xyz, xyz)                                 # (B, M, N)
    grouped_inds = jnp.where(dists > radius, N, grouped_inds)
    grouped_inds = jnp.sort(grouped_inds, axis=-1)[:, :, :K]
    grouped_min = jnp.repeat(grouped_inds[:, :, 0:1], K, axis=-1)
    grouped_inds = jnp.where(grouped_inds == N, grouped_min, grouped_inds)
    return grouped_inds                                             # (B, M, K)


def gather_points(points, inds):
    # points: (B, N, C); inds: (B, M) or (B, M, K)
    B = points.shape[0]
    batch = jnp.arange(B).reshape((B,) + (1,) * (inds.ndim - 1))
    return points[batch, inds]


def sample_and_group(xyz, points, M, radius, K, key, use_xyz=True):
    new_xyz = gather_points(xyz, fps(xyz, M, key))                  # (B, M, 3)
    grouped_inds = ball_query(xyz, new_xyz, radius, K)              # (B, M, K)
    grouped_xyz = gather_points(xyz, grouped_inds)                  # (B, M, K, 3)
    grouped_xyz = grouped_xyz - new_xyz[:, :, None, :]
    if points is not None:
        grouped_points = gather_points(points, grouped_inds)        # (B, M, K, C)
        if use_xyz:
            new_points = jnp.concatenate(
                [grouped_xyz.astype(jnp.float32),
                 grouped_points.astype(jnp.float32)], axis=-1)
        else:
            new_points = grouped_points
    else:
        new_points = grouped_xyz
    return new_xyz, new_points, grouped_inds, grouped_xyz


# ----------------------------------------------------------------------------
# Parameter packing (hoisted out of the forward path; call once per model).
# ----------------------------------------------------------------------------
def init_params(key, in_channels, mlp, eps=1e-5):
    """Deterministic Conv2d (1x1, no bias) + BatchNorm2d params, BN in eval form."""
    params = []
    c_in = in_channels
    for i, c_out in enumerate(mlp):
        kw, kg, kb, km, kv = jax.random.split(jax.random.fold_in(key, i), 5)
        # Conv2d weight (Cout, Cin, 1, 1) -> stored transposed as (Cin, Cout)
        w = jax.random.normal(kw, (c_in, c_out), jnp.float32) * 0.1
        gamma = 1.0 + 0.1 * jax.random.normal(kg, (c_out,), jnp.float32)
        beta = 0.1 * jax.random.normal(kb, (c_out,), jnp.float32)
        running_mean = 0.1 * jax.random.normal(km, (c_out,), jnp.float32)
        running_var = jnp.abs(1.0 + 0.1 * jax.random.normal(kv, (c_out,), jnp.float32))
        scale = gamma / jnp.sqrt(running_var + eps)
        shift = beta - running_mean * scale
        params.append((w, scale.reshape(1, c_out), shift.reshape(1, c_out)))
        c_in = c_out
    return params


def pack_params(layer_params, in_channels):
    """Fold the eval-BN scale into the 1x1-conv weight columns and pack layers.

    Padded-lane invariant: all padded weight rows/columns and padded shift lanes
    are exactly 0, so dead lanes stay 0 through ReLU and later contractions.
    """
    n_layers = len(layer_params)
    cin_pad = _round_up(in_channels, 8)
    assert layer_params[0][0].shape[0] == in_channels
    assert all(p[0].shape[0] <= PAD and p[0].shape[1] <= PAD for p in layer_params)

    w0 = jnp.zeros((cin_pad, PAD), jnp.float32)               # layer-0: narrow contraction
    n_rest = max(n_layers - 1, 1)
    w_rest = jnp.zeros((n_rest, PAD, PAD), jnp.float32)       # layers 1..L-1
    shifts = jnp.zeros((n_layers, 1, PAD), jnp.float32)       # folded-BN shifts only

    for l, (w, scale, shift) in enumerate(layer_params):
        ci, co = w.shape
        w_scaled = w * scale.reshape(1, co)                    # BN scale folded into W
        if l == 0:
            w0 = w0.at[:ci, :co].set(w_scaled)
        else:
            w_rest = w_rest.at[l - 1, :ci, :co].set(w_scaled)
        shifts = shifts.at[l, 0, :co].set(shift.reshape(-1))

    return dict(
        w0=w0.astype(jnp.bfloat16),
        w_rest=w_rest.astype(jnp.bfloat16),
        shifts=shifts,
        cin=in_channels, cin_pad=cin_pad,
        n_layers=n_layers, cout_last=layer_params[-1][0].shape[1])


# ----------------------------------------------------------------------------
# Pallas kernel: shared MLP (matmul + folded-BN shift + ReLU) + max over K.
# ----------------------------------------------------------------------------
def _make_sa_mlp_kernel(n_layers, K, tile_groups, chunk_groups):
    n_chunks = tile_groups // chunk_groups
    chunk_rows = chunk_groups * K

    def kernel(x_ref, w0_ref, w_ref, sh_ref, o_ref):
        """x_ref : (tile_groups*K, cin_pad) bf16 -- narrow (un-padded) activations
           w0_ref: (cin_pad, 128) bf16          -- layer-0 weight, BN scale folded in
           w_ref : (max(L-1,1), 128, 128) bf16  -- mid/last weights, BN scale folded in
           sh_ref: (L, 1, 128) f32              -- folded-BN shifts
           o_ref : (tile_groups, 128) f32       -- lane-dense pooled output
        """
        w0 = w0_ref[...]
        sh = sh_ref[...]                                   # (L, 1, 128) f32

        def process_chunk(c):
            r0 = c * chunk_rows
            g0 = c * chunk_groups
            if not isinstance(c, int):
                r0 = pl.multiple_of(r0, chunk_rows)
                g0 = pl.multiple_of(g0, chunk_groups)
            h = x_ref[pl.ds(r0, chunk_rows), :]            # (chunk_rows, cin_pad) bf16
            # layer 0: narrow contraction (cin_pad <= 16), MXU, f32 accumulate
            acc = jnp.dot(h, w0, preferred_element_type=jnp.float32)
            acc = jnp.maximum(acc + sh[0], 0.0)            # folded-BN shift + ReLU
            for l in range(n_layers - 1):                  # 128-wide layers
                acc = jnp.dot(acc.astype(jnp.bfloat16), w_ref[l],
                              preferred_element_type=jnp.float32)
                acc = jnp.maximum(acc + sh[l + 1], 0.0)
            # max pooling over the K (neighbor) axis == torch.max(new_points, dim=2)[0]
            pooled = jnp.max(acc.reshape(chunk_groups, K, PAD), axis=1)
            o_ref[pl.ds(g0, chunk_groups), :] = pooled

        if n_chunks == 1:
            process_chunk(0)                               # fully static indexing
        else:
            pl.loop(0, n_chunks)(process_chunk)            # bounded VMEM temporaries

    return kernel


def _select_tiles(G, K, tile_groups, target_chunk_rows):
    """tile_groups / chunk_groups: multiples of 16; chunk_groups divides tile_groups."""
    g16 = _round_up(max(G, 1), 16)
    tg = min(max(16, _round_up(tile_groups, 16)), g16)
    # Prefer >=2 grid steps so ("parallel",) can shard across v7x's two TensorCores
    # (harmless on single-TC v5e/v6e).
    half = (g16 // 2) // 16 * 16
    if half >= 16 and tg > half:
        tg = half
    G_pad = _round_up(G, tg)
    cg = 16
    while cg * 2 <= tg and tg % (cg * 2) == 0 and (cg * 2) * K <= target_chunk_rows:
        cg *= 2
    return tg, G_pad, cg


def sa_mlp_pallas(new_points, packed, tile_groups=512, target_chunk_rows=1024):
    """new_points: (B, M, K, Cin) -> (B, M, mlp[-1])."""
    B, M, K, Cin = new_points.shape
    assert Cin == packed["cin"], (Cin, packed["cin"])
    cin_pad = packed["cin_pad"]
    n_layers = packed["n_layers"]
    cout_last = packed["cout_last"]
    w0, w_rest, shifts = packed["w0"], packed["w_rest"], packed["shifts"]

    G = B * M
    tg, G_pad, cg = _select_tiles(G, K, tile_groups, target_chunk_rows)

    # HBM-side activations: rows = group-points, last dim padded only to 8 (full array
    # extent, so the (8,128) BlockSpec rule is satisfied) -> no 128-lane HBM inflation.
    x = new_points.reshape(G, K, Cin).astype(jnp.bfloat16)
    x = jnp.pad(x, ((0, G_pad - G), (0, 0), (0, cin_pad - Cin)))
    x = x.reshape(G_pad * K, cin_pad)

    kernel = _make_sa_mlp_kernel(n_layers, K, tg, cg)
    n_rest = w_rest.shape[0]
    grid = (G_pad // tg,)

    flops = 2 * G_pad * K * (cin_pad * PAD + (n_layers - 1) * PAD * PAD)
    bytes_accessed = (x.size * 2 + G_pad * PAD * 4
                      + w0.size * 2 + w_rest.size * 2 + shifts.size * 4)

    out = pl.pallas_call(
        kernel,
        out_shape=jax.ShapeDtypeStruct((G_pad, PAD), jnp.float32),
        grid=grid,
        in_specs=[
            pl.BlockSpec((tg * K, cin_pad), lambda g: (g, 0)),
            pl.BlockSpec((cin_pad, PAD), lambda g: (0, 0)),
            pl.BlockSpec((n_rest, PAD, PAD), lambda g: (0, 0, 0)),
            pl.BlockSpec((n_layers, 1, PAD), lambda g: (0, 0, 0)),
        ],
        out_specs=pl.BlockSpec((tg, PAD), lambda g: (g, 0)),
        compiler_params=pltpu.CompilerParams(
            dimension_semantics=("parallel",),
            # generation-safe scoped-VMEM budget (v7x physical VMEM is 64 MiB)
            vmem_limit_bytes=48 * 1024 * 1024),
        cost_estimate=pl.CostEstimate(
            flops=int(flops), transcendentals=0,
            bytes_accessed=int(bytes_accessed)),
    )(x, w0, w_rest, shifts)

    return out[:G, :cout_last].reshape(B, M, cout_last)


# ----------------------------------------------------------------------------
# Module wrapper (PointNet_SA_Module_1 forward, non-group_all, max pooling).
# ----------------------------------------------------------------------------
def pointnet_sa_module_1_forward(xyz, points, M, radius, K, packed_params,
                                 fps_key, use_xyz=True):
    # TODO(synk): group_all=True and pooling='avg' branches not implemented here.
    new_xyz, new_points, _, _ = sample_and_group(
        xyz, points, M=M, radius=radius, K=K, key=fps_key, use_xyz=use_xyz)
    new_feats = sa_mlp_pallas(new_points, packed_params)       # (B, M, mlp[-1])
    return new_xyz, new_feats


if __name__ == "__main__":
    key = jax.random.PRNGKey(0)
    k_xyz, k_pts, k_fps, k_par = jax.random.split(key, 4)

    B, N, C_feat = 2, 64, 4
    M, radius, K = 8, 1.0, 16
    mlp = [16, 32]
    in_channels = C_feat + 3  # use_xyz=True

    xyz = jax.random.normal(k_xyz, (B, N, 3), jnp.float32)
    points = jax.random.normal(k_pts, (B, N, C_feat), jnp.float32)
    layer_params = init_params(k_par, in_channels, mlp)
    packed = pack_params(layer_params, in_channels)            # hoisted out of forward

    new_xyz, new_feats = pointnet_sa_module_1_forward(
        xyz, points, M, radius, K, packed, k_fps)
    jax.block_until_ready((new_xyz, new_feats))

    assert new_xyz.shape == (B, M, 3)
    assert new_feats.shape == (B, M, mlp[-1])
    assert bool(jnp.all(jnp.isfinite(new_feats)))

    # f32 reference for the MLP + max-pool stage (kernel uses bf16 MXU inputs,
    # so compare with a generous tolerance).
    _, new_points_ref, _, _ = sample_and_group(
        xyz, points, M=M, radius=radius, K=K, key=k_fps, use_xyz=True)
    ref = new_points_ref.astype(jnp.float32)
    for (w, scale, shift) in layer_params:
        ref = jnp.maximum(jnp.einsum('bmkc,cd->bmkd', ref, w) * scale + shift, 0.0)
    ref = jnp.max(ref, axis=2)                                 # (B, M, mlp[-1])
    err = float(jnp.max(jnp.abs(new_feats - ref)))
    tol = 0.05 * float(jnp.max(jnp.abs(ref))) + 1e-2
    assert err <= tol, (err, tol)

    print("KERNEL_OK")
</pallas_src>

<mosaic_0001>
module attributes {stable_mosaic.version = 11 : i64} {
  func.func @kernel(%arg0: i32, %arg1: memref<256x8xbf16, #tpu.memory_space<vmem>>, %arg2: memref<8x128xbf16, #tpu.memory_space<vmem>>, %arg3: memref<1x128x128xbf16, #tpu.memory_space<vmem>>, %arg4: memref<2x1x128xf32, #tpu.memory_space<vmem>>, %arg5: memref<16x128xf32, #tpu.memory_space<vmem>>) attributes {dimension_semantics = [#tpu.dimension_semantics<parallel>], iteration_bounds = array<i64: 1>, scalar_prefetch = 0 : i64, scratch_operands = 0 : i64, tpu.core_type = #tpu.core_type<tc>, window_params = [{transform_indices = @transform_0, window_bounds = array<i64: 256, 8>}, {pipeline_mode = #tpu.pipeline_mode<synchronous>, transform_indices = @transform_1, window_bounds = array<i64: 8, 128>}, {pipeline_mode = #tpu.pipeline_mode<synchronous>, transform_indices = @transform_2, window_bounds = array<i64: 1, 128, 128>}, {pipeline_mode = #tpu.pipeline_mode<synchronous>, transform_indices = @transform_3, window_bounds = array<i64: 2, 1, 128>}, {transform_indices = @transform_4, window_bounds = array<i64: 16, 128>}]} {
    %c0 = arith.constant 0 : index
    %c0_0 = arith.constant 0 : index
    %0 = vector.load %arg2[%c0, %c0_0] : memref<8x128xbf16, #tpu.memory_space<vmem>>, vector<8x128xbf16>
    %c0_1 = arith.constant 0 : index
    %c0_2 = arith.constant 0 : index
    %c0_3 = arith.constant 0 : index
    %1 = vector.load %arg4[%c0_1, %c0_2, %c0_3] : memref<2x1x128xf32, #tpu.memory_space<vmem>>, vector<2x1x128xf32>
    %c0_4 = arith.constant 0 : index
    %c0_5 = arith.constant 0 : index
    %2 = vector.load %arg1[%c0_4, %c0_5] : memref<256x8xbf16, #tpu.memory_space<vmem>>, vector<256x8xbf16>
    %cst = arith.constant dense<0.000000e+00> : vector<256x128xf32>
    %3 = tpu.matmul %2, %0, %cst {dimension_numbers = #tpu.dot_dimension_numbers<[1], [0], [0], [1], [0, 0, 1, 1], [], []>} : vector<256x8xbf16>, vector<8x128xbf16>, vector<256x128xf32> -> vector<256x128xf32>
    %4 = vector.extract_strided_slice %1 {offsets = [0, 0, 0], sizes = [1, 1, 128], strides = [1, 1, 1]} : vector<2x1x128xf32> to vector<1x1x128xf32>
    %5 = vector.shape_cast %4 : vector<1x1x128xf32> to vector<1x128xf32>
    %6 = vector.broadcast %5 : vector<1x128xf32> to vector<256x128xf32>
    %7 = arith.addf %3, %6 : vector<256x128xf32>
    %cst_6 = arith.constant 0.000000e+00 : f32
    %8 = vector.broadcast %cst_6 : f32 to vector<256x128xf32>
    %9 = arith.maximumf %7, %8 : vector<256x128xf32>
    %10 = arith.truncf %9 : vector<256x128xf32> to vector<256x128xbf16>
    %c0_7 = arith.constant 0 : index
    %c0_8 = arith.constant 0 : index
    %c0_9 = arith.constant 0 : index
    %11 = vector.load %arg3[%c0_7, %c0_8, %c0_9] : memref<1x128x128xbf16, #tpu.memory_space<vmem>>, vector<1x128x128xbf16>
    %12 = vector.shape_cast %11 : vector<1x128x128xbf16> to vector<128x128xbf16>
    %cst_10 = arith.constant dense<0.000000e+00> : vector<256x128xf32>
    %13 = tpu.matmul %10, %12, %cst_10 {dimension_numbers = #tpu.dot_dimension_numbers<[1], [0], [0], [1], [0, 0, 1, 1], [], []>} : vector<256x128xbf16>, vector<128x128xbf16>, vector<256x128xf32> -> vector<256x128xf32>
    %14 = vector.extract_strided_slice %1 {offsets = [1, 0, 0], sizes = [1, 1, 128], strides = [1, 1, 1]} : vector<2x1x128xf32> to vector<1x1x128xf32>
    %15 = vector.shape_cast %14 : vector<1x1x128xf32> to vector<1x128xf32>
    %16 = vector.broadcast %15 : vector<1x128xf32> to vector<256x128xf32>
    %17 = arith.addf %13, %16 : vector<256x128xf32>
    %cst_11 = arith.constant 0.000000e+00 : f32
    %18 = vector.broadcast %cst_11 : f32 to vector<256x128xf32>
    %19 = arith.maximumf %17, %18 : vector<256x128xf32>
    %20 = vector.shape_cast %19 : vector<256x128xf32> to vector<16x16x128xf32>
    %cst_12 = arith.constant dense<0xFF800000> : vector<16x128xf32>
    %21 = vector.multi_reduction <maximumf>, %20, %cst_12 [1] : vector<16x16x128xf32> to vector<16x128xf32>
    %c0_13 = arith.constant 0 : index
    %c0_14 = arith.constant 0 : index
    %22 = vector.load %arg5[%c0_13, %c0_14] : memref<16x128xf32, #tpu.memory_space<vmem>>, vector<16x128xf32>
    tpu.vector_store %arg5[%c0_13, %c0_14], %21 {strides = array<i32>} : memref<16x128xf32, #tpu.memory_space<vmem>>, vector<16x128xf32>,
    return
  }
  func.func @transform_0(%arg0: i32) -> (i32, i32) {
    %c0_i32 = arith.constant 0 : i32
    %c0_i32_0 = arith.constant 0 : i32
    return %arg0, %c0_i32 : i32, i32
  }
  func.func @transform_1(%arg0: i32) -> (i32, i32) {
    %c0_i32 = arith.constant 0 : i32
    %c0_i32_0 = arith.constant 0 : i32
    %c0_i32_1 = arith.constant 0 : i32
    return %c0_i32, %c0_i32_0 : i32, i32
  }
  func.func @transform_2(%arg0: i32) -> (i32, i32, i32) {
    %c0_i32 = arith.constant 0 : i32
    %c0_i32_0 = arith.constant 0 : i32
    %c0_i32_1 = arith.constant 0 : i32
    %c0_i32_2 = arith.constant 0 : i32
    return %c0_i32, %c0_i32_0, %c0_i32_1 : i32, i32, i32
  }
  func.func @transform_3(%arg0: i32) -> (i32, i32, i32) {
    %c0_i32 = arith.constant 0 : i32
    %c0_i32_0 = arith.constant 0 : i32
    %c0_i32_1 = arith.constant 0 : i32
    %c0_i32_2 = arith.constant 0 : i32
    return %c0_i32, %c0_i32_0, %c0_i32_1 : i32, i32, i32
  }
  func.func @transform_4(%arg0: i32) -> (i32, i32) {
    %c0_i32 = arith.constant 0 : i32
    %c0_i32_0 = arith.constant 0 : i32
    return %arg0, %c0_i32 : i32, i32
  }
}

</mosaic_0001>

<llo_original>
// kernel: tpu_custom_call.1
$region0: #{tpu_custom_call.1}
  #allocation0 [shape = 'u32[]', space=smem, size = 0x4, offset = 0x4, fixed_abs, tag = 'smem constant byte address 0x4 - core index']
  #allocation1 [shape = 'u32[144,128]{1,0:T(1,128)}', space=vmem, size = 0x12000, scoped, tag = 'internal scratch']
  %s0 = inlined_call_operand.vmem [shape: bf16[256,8], index: 0, kind: input, shape index: {}]
  %s1 = inlined_call_operand.vmem [shape: bf16[8,128], index: 1, kind: input, shape index: {}]
  %s2 = inlined_call_operand.vmem [shape: bf16[1,128,128], index: 2, kind: input, shape index: {}]
  %s3 = inlined_call_operand.vmem [shape: f32[2,1,128], index: 3, kind: input, shape index: {}]
  %s4 = inlined_call_operand.hbm [shape: f32[16,128], index: 4, kind: output, shape index: {}]
  %s5 = sld [smem:[#allocation0]]
  $region26: #{tpu_custom_call.1} parent=0
    _
  %s7 = ssub.s32 1, %s5
  %s8 = scalar_select 0, %s7, %s5
  $region1: #{tpu_custom_call.1} parent=0
    #allocation2 [shape = 'u8[8192]{0}', space=vmem, size = 0x2000, scoped, tag = 'output window, operand 0, single buffered']
    #allocation3 [shape = 's32[1]{0}', space=sflag, size = 0x4, scoped, tag = 'scoped memory for tpu_custom_call.1']
    %9 = vsyncpa [#allocation3], 0
    // Predicated region
    $region2: #{tpu_custom_call.1} parent=1 // pred_check
      _
    $region3: #{tpu_custom_call.1} parent=1 // pred_check_branch
      %11 = sbr.rel (0) target = $region5
    $region4: #{tpu_custom_call.1} parent=1 // pred_region
      _
    $region5: #{tpu_custom_call.1} parent=1 // pred_fallthru
      _
    // Predicated region
    $region6: #{tpu_custom_call.1} parent=1 // pred_check
      _
    $region7: #{tpu_custom_call.1} parent=1 // pred_check_branch
      %13 = sbr.rel (0) target = $region9
    $region8: #{tpu_custom_call.1} parent=1 // pred_region
      _
    $region9: #{tpu_custom_call.1} parent=1 // pred_fallthru
      _
    // Predicated region
    $region10: #{tpu_custom_call.1} parent=1 // pred_check
      _
    $region11: #{tpu_custom_call.1} parent=1 // pred_check_branch
      %15 = sbr.rel (0) target = $region13
    $region12: #{tpu_custom_call.1} parent=1 // pred_region
      _
    $region13: #{tpu_custom_call.1} parent=1 // pred_fallthru
      _
    // Predicated region
    $region14: #{tpu_custom_call.1} parent=1 // pred_check
      _
    $region15: #{tpu_custom_call.1} parent=1 // pred_check_branch
      %17 = sbr.rel (0) target = $region17
    $region16: #{tpu_custom_call.1} parent=1 // pred_region
      _
    $region17: #{tpu_custom_call.1} parent=1 // pred_fallthru
      _
    %v19 = vld [vmem:[%s1] sm:$0xf]
    %v20 = vld [vmem:[%s3] sm:$0x1]
    %v21 = vld [vmem:[%s3 + $0x1] sm:$0x1]
    %v22 = vld [vmem:[%s0] sm:$0xf]
    %v23 = vld [vmem:[%s0 + $0x4] sm:$0xf]
    %v24 = vld [vmem:[%s0 + $0x8] sm:$0xf]
    %v25 = vld [vmem:[%s0 + $0xc] sm:$0xf]
    %v26 = vld [vmem:[%s0 + $0x10] sm:$0xf]
    %v27 = vld [vmem:[%s0 + $0x14] sm:$0xf]
    %v28 = vld [vmem:[%s0 + $0x18] sm:$0xf]
    %v29 = vld [vmem:[%s0 + $0x1c] sm:$0xf]
    %v30 = vld [vmem:[%s0 + $0x20] sm:$0xf]
    %v31 = vld [vmem:[%s0 + $0x24] sm:$0xf]
    %v32 = vld [vmem:[%s0 + $0x28] sm:$0xf]
    %v33 = vld [vmem:[%s0 + $0x2c] sm:$0xf]
    %v34 = vld [vmem:[%s0 + $0x30] sm:$0xf]
    %v35 = vld [vmem:[%s0 + $0x34] sm:$0xf]
    %v36 = vld [vmem:[%s0 + $0x38] sm:$0xf]
    %v37 = vld [vmem:[%s0 + $0x3c] sm:$0xf]
    %v38 = vld [vmem:[%s0 + $0x40] sm:$0xf]
    %v39 = vld [vmem:[%s0 + $0x44] sm:$0xf]
    %v40 = vld [vmem:[%s0 + $0x48] sm:$0xf]
    %v41 = vld [vmem:[%s0 + $0x4c] sm:$0xf]
    %v42 = vld [vmem:[%s0 + $0x50] sm:$0xf]
    %v43 = vld [vmem:[%s0 + $0x54] sm:$0xf]
    %v44 = vld [vmem:[%s0 + $0x58] sm:$0xf]
    %v45 = vld [vmem:[%s0 + $0x5c] sm:$0xf]
    %v46 = vld [vmem:[%s0 + $0x60] sm:$0xf]
    %v47 = vld [vmem:[%s0 + $0x64] sm:$0xf]
    %v48 = vld [vmem:[%s0 + $0x68] sm:$0xf]
    %v49 = vld [vmem:[%s0 + $0x6c] sm:$0xf]
    %v50 = vld [vmem:[%s0 + $0x70] sm:$0xf]
    %v51 = vld [vmem:[%s0 + $0x74] sm:$0xf]
    %v52 = vld [vmem:[%s0 + $0x78] sm:$0xf]
    %v53 = vld [vmem:[%s0 + $0x7c] sm:$0xf]
    %v55 = vlaneseq
    %v56 = vshrl.u32 %v55, 7
    %v57 = vsub.s32 0, %v56
    %v58 = vrot.slane %v20, %v57
    %v92 = vunpack.c.l.b16 %v22
    %v93 = vunpack.c.l.b16 %v23
    %v94 = vunpack.c.l.b16 %v24
    %v95 = vunpack.c.l.b16 %v25
    %v96 = vunpack.c.l.b16 %v26
    %v97 = vunpack.c.l.b16 %v27
    %v98 = vunpack.c.l.b16 %v28
    %v99 = vunpack.c.l.b16 %v29
    %v100 = vunpack.c.l.b16 %v30
    %v101 = vunpack.c.l.b16 %v31
    %v102 = vunpack.c.l.b16 %v32
    %v103 = vunpack.c.l.b16 %v33
    %v104 = vunpack.c.l.b16 %v34
    %v105 = vunpack.c.l.b16 %v35
    %v106 = vunpack.c.l.b16 %v36
    %v107 = vunpack.c.l.b16 %v37
    %v108 = vunpack.c.l.b16 %v38
    %v109 = vunpack.c.l.b16 %v39
    %v110 = vunpack.c.l.b16 %v40
    %v111 = vunpack.c.l.b16 %v41
    %v112 = vunpack.c.l.b16 %v42
    %v113 = vunpack.c.l.b16 %v43
    %v114 = vunpack.c.l.b16 %v44
    %v115 = vunpack.c.l.b16 %v45
    %v116 = vunpack.c.l.b16 %v46
    %v117 = vunpack.c.l.b16 %v47
    %v118 = vunpack.c.l.b16 %v48
    %v119 = vunpack.c.l.b16 %v49
    %v120 = vunpack.c.l.b16 %v50
    %v121 = vunpack.c.l.b16 %v51
    %v122 = vunpack.c.l.b16 %v52
    %v123 = vunpack.c.l.b16 %v53
    %v124 = vpack.c.b16 %v93, %v92
    %v125 = vpack.c.b16 %v95, %v94
    %v126 = vpack.c.b16 %v97, %v96
    %v127 = vpack.c.b16 %v99, %v98
    %v128 = vpack.c.b16 %v101, %v100
    %v129 = vpack.c.b16 %v103, %v102
    %v130 = vpack.c.b16 %v105, %v104
    %v131 = vpack.c.b16 %v107, %v106
    %v132 = vpack.c.b16 %v109, %v108
    %v133 = vpack.c.b16 %v111, %v110
    %v134 = vpack.c.b16 %v113, %v112
    %v135 = vpack.c.b16 %v115, %v114
    %v136 = vpack.c.b16 %v117, %v116
    %v137 = vpack.c.b16 %v119, %v118
    %v138 = vpack.c.b16 %v121, %v120
    %v139 = vpack.c.b16 %v123, %v122
    %vm140 = vcmask 64512
    %v142 = vsel %vm140, %v124, 0
    %v145 = vsel %vm140, %v125, 0
    %v148 = vsel %vm140, %v126, 0
    %v151 = vsel %vm140, %v127, 0
    %v154 = vsel %vm140, %v128, 0
    %v157 = vsel %vm140, %v129, 0
    %v160 = vsel %vm140, %v130, 0
    %v163 = vsel %vm140, %v131, 0
    %v166 = vsel %vm140, %v132, 0
    %v169 = vsel %vm140, %v133, 0
    %v172 = vsel %vm140, %v134, 0
    %v175 = vsel %vm140, %v135, 0
    %v178 = vsel %vm140, %v136, 0
    %v181 = vsel %vm140, %v137, 0
    %v184 = vsel %vm140, %v138, 0
    %v187 = vsel %vm140, %v139, 0
    %vm189 = vcmask 1043456
    %v191 = vsel %vm189, %v19, 0
    %193 = vmatprep.subr.bf16.mxu0 0
    %194 = vmatpush1.bf16.msra.mxu0 %v191
    %195 = vmatprep.subr.bf16.mxu0 0
    %196 = vmatpush1.bf16.msra.mxu0 0
    %197 = vmatprep.subr.bf16.mxu0 0
    %198 = vmatpush1.bf16.msra.mxu0 0
    %199 = vmatprep.subr.bf16.mxu0 0
    %200 = vmatpush1.bf16.msra.mxu0 0
    %201 = vmatprep.subr.bf16.mxu0 0
    %202 = vmatpush1.bf16.msra.mxu0 0
    %203 = vmatprep.subr.bf16.mxu0 0
    %204 = vmatpush1.bf16.msra.mxu0 0
    %205 = vmatprep.subr.bf16.mxu0 0
    %206 = vmatpush1.bf16.msra.mxu0 0
    %207 = vmatprep.subr.bf16.mxu0 0
    %208 = vmatpush1.bf16.msra.mxu0 0
    %209 = vmatprep.subr.bf16.mxu0 0
    %210 = vmatpush1.bf16.msra.mxu0 0
    %211 = vmatprep.subr.bf16.mxu0 0
    %212 = vmatpush1.bf16.msra.mxu0 0
    %213 = vmatprep.subr.bf16.mxu0 0
    %214 = vmatpush1.bf16.msra.mxu0 0
    %215 = vmatprep.subr.bf16.mxu0 0
    %216 = vmatpush1.bf16.msra.mxu0 0
    %217 = vmatprep.subr.bf16.mxu0 0
    %218 = vmatpush1.bf16.msra.mxu0 0
    %219 = vmatprep.subr.bf16.mxu0 0
    %220 = vmatpush1.bf16.msra.mxu0 0
    %221 = vmatprep.subr.bf16.mxu0 0
    %222 = vmatpush1.bf16.msra.mxu0 0
    %223 = vmatprep.subr.bf16.mxu0 0
    %224 = vmatpush1.bf16.msra.mxu0 0
    %225 = vmatprep.mubr.bf16.mxu0 0
    %226 = vmatmul.mubr.bf16.gmra.mrb[0].mxu0 %v142
    %v227 = vpop.f32.mrb[0].mxu0
    %v228 = vadd.f32 %v58, %v227
    %v229 = vpop.f32.mrb[0].mxu0
    %v230 = vpop.f32.mrb[0].mxu0
    %v231 = vadd.f32 %v58, %v230
    %v232 = vpop.f32.mrb[0].mxu0
    %233 = vmatprep.mubr.bf16.mxu0 0
    %234 = vmatmul.mubr.bf16.gmra.mrb[0].mxu0 %v145
    %v235 = vpop.f32.mrb[0].mxu0
    %v236 = vadd.f32 %v58, %v235
    %v237 = vpop.f32.mrb[0].mxu0
    %v238 = vpop.f32.mrb[0].mxu0
    %v239 = vadd.f32 %v58, %v238
    %v240 = vpop.f32.mrb[0].mxu0
    %241 = vmatprep.mubr.bf16.mxu0 0
    %242 = vmatmul.mubr.bf16.gmra.mrb[0].mxu0 %v148
    %v243 = vpop.f32.mrb[0].mxu0
    %v244 = vadd.f32 %v58, %v243
    %v245 = vpop.f32.mrb[0].mxu0
    %v246 = vpop.f32.mrb[0].mxu0
    %v247 = vadd.f32 %v58, %v246
    %v248 = vpop.f32.mrb[0].mxu0
    %249 = vmatprep.mubr.bf16.mxu0 0
    %250 = vmatmul.mubr.bf16.gmra.mrb[0].mxu0 %v151
    %v251 = vpop.f32.mrb[0].mxu0
    %v252 = vadd.f32 %v58, %v251
    %v253 = vpop.f32.mrb[0].mxu0
    %v254 = vpop.f32.mrb[0].mxu0
    %v255 = vadd.f32 %v58, %v254
    %v256 = vpop.f32.mrb[0].mxu0
    %257 = vmatprep.mubr.bf16.mxu0 0
    %258 = vmatmul.mubr.bf16.gmra.mrb[0].mxu0 %v154
    %v259 = vpop.f32.mrb[0].mxu0
    %v260 = vadd.f32 %v58, %v259
    %v261 = vpop.f32.mrb[0].mxu0
    %v262 = vpop.f32.mrb[0].mxu0
    %v263 = vadd.f32 %v58, %v262
    %v264 = vpop.f32.mrb[0].mxu0
    %265 = vmatprep.mubr.bf16.mxu0 0
    %266 = vmatmul.mubr.bf16.gmra.mrb[0].mxu0 %v157
    %v267 = vpop.f32.mrb[0].mxu0
    %v268 = vadd.f32 %v58, %v267
    %v269 = vpop.f32.mrb[0].mxu0
    %v270 = vpop.f32.mrb[0].mxu0
    %v271 = vadd.f32 %v58, %v270
    %v272 = vpop.f32.mrb[0].mxu0
    %273 = vmatprep.mubr.bf16.mxu0 0
    %274 = vmatmul.mubr.bf16.gmra.mrb[0].mxu0 %v160
    %v275 = vpop.f32.mrb[0].mxu0
    %v276 = vadd.f32 %v58, %v275
    %v277 = vpop.f32.mrb[0].mxu0
    %v278 = vpop.f32.mrb[0].mxu0
    %v279 = vadd.f32 %v58, %v278
    %v280 = vpop.f32.mrb[0].mxu0
    %281 = vmatprep.mubr.bf16.mxu0 0
    %282 = vmatmul.mubr.bf16.gmra.mrb[0].mxu0 %v163
    %v283 = vpop.f32.mrb[0].mxu0
    %v284 = vadd.f32 %v58, %v283
    %v285 = vpop.f32.mrb[0].mxu0
    %v286 = vpop.f32.mrb[0].mxu0
    %v287 = vadd.f32 %v58, %v286
    %v288 = vpop.f32.mrb[0].mxu0
    %289 = vmatprep.mubr.bf16.mxu0 0
    %290 = vmatmul.mubr.bf16.gmra.mrb[0].mxu0 %v166
    %v291 = vpop.f32.mrb[0].mxu0
    %v292 = vadd.f32 %v58, %v291
    %v293 = vpop.f32.mrb[0].mxu0
    %v294 = vpop.f32.mrb[0].mxu0
    %v295 = vadd.f32 %v58, %v294
    %v296 = vpop.f32.mrb[0].mxu0
    %297 = vmatprep.mubr.bf16.mxu0 0
    %298 = vmatmul.mubr.bf16.gmra.mrb[0].mxu0 %v169
    %v299 = vpop.f32.mrb[0].mxu0
    %v300 = vadd.f32 %v58, %v299
    %v301 = vpop.f32.mrb[0].mxu0
    %v302 = vpop.f32.mrb[0].mxu0
    %v303 = vadd.f32 %v58, %v302
    %v304 = vpop.f32.mrb[0].mxu0
    %305 = vmatprep.mubr.bf16.mxu0 0
    %306 = vmatmul.mubr.bf16.gmra.mrb[0].mxu0 %v172
    %v307 = vpop.f32.mrb[0].mxu0
    %v308 = vadd.f32 %v58, %v307
    %v309 = vpop.f32.mrb[0].mxu0
    %v310 = vpop.f32.mrb[0].mxu0
    %v311 = vadd.f32 %v58, %v310
    %v312 = vpop.f32.mrb[0].mxu0
    %313 = vmatprep.mubr.bf16.mxu0 0
    %314 = vmatmul.mubr.bf16.gmra.mrb[0].mxu0 %v175
    %v315 = vpop.f32.mrb[0].mxu0
    %v316 = vadd.f32 %v58, %v315
    %v317 = vpop.f32.mrb[0].mxu0
    %v318 = vpop.f32.mrb[0].mxu0
    %v319 = vadd.f32 %v58, %v318
    %v320 = vpop.f32.mrb[0].mxu0
    %321 = vmatprep.mubr.bf16.mxu0 0
    %322 = vmatmul.mubr.bf16.gmra.mrb[0].mxu0 %v178
    %v323 = vpop.f32.mrb[0].mxu0
    %v324 = vadd.f32 %v58, %v323
    %v325 = vpop.f32.mrb[0].mxu0
    %v326 = vpop.f32.mrb[0].mxu0
    %v327 = vadd.f32 %v58, %v326
    %v328 = vpop.f32.mrb[0].mxu0
    %329 = vmatprep.mubr.bf16.mxu0 0
    %330 = vmatmul.mubr.bf16.gmra.mrb[0].mxu0 %v181
    %v331 = vpop.f32.mrb[0].mxu0
    %v332 = vadd.f32 %v58, %v331
    %v333 = vpop.f32.mrb[0].mxu0
    %v334 = vpop.f32.mrb[0].mxu0
    %v335 = vadd.f32 %v58, %v334
    %v336 = vpop.f32.mrb[0].mxu0
    %337 = vmatprep.mubr.bf16.mxu0 0
    %338 = vmatmul.mubr.bf16.gmra.mrb[0].mxu0 %v184
    %v339 = vpop.f32.mrb[0].mxu0
    %v340 = vadd.f32 %v58, %v339
    %v341 = vpop.f32.mrb[0].mxu0
    %v342 = vpop.f32.mrb[0].mxu0
    %v343 = vadd.f32 %v58, %v342
    %v344 = vpop.f32.mrb[0].mxu0
    %345 = vmatprep.mubr.bf16.mxu0 0
    %346 = vmatmul.mubr.bf16.gmra.mrb[0].mxu0 %v187
    %v347 = vpop.f32.mrb[0].mxu0
    %v348 = vadd.f32 %v58, %v347
    %v349 = vpop.f32.mrb[0].mxu0
    %v350 = vpop.f32.mrb[0].mxu0
    %v351 = vadd.f32 %v58, %v350
    %v352 = vpop.f32.mrb[0].mxu0
    %353 = vdwg.mxu0
    %v354 = vmax.f32 %v228, 0.0
    %v355 = vmax.f32 %v231, 0.0
    %v356 = vmax.f32 %v236, 0.0
    %v357 = vmax.f32 %v239, 0.0
    %v358 = vmax.f32 %v244, 0.0
    %v359 = vmax.f32 %v247, 0.0
    %v360 = vmax.f32 %v252, 0.0
    %v361 = vmax.f32 %v255, 0.0
    %v362 = vmax.f32 %v260, 0.0
    %v363 = vmax.f32 %v263, 0.0
    %v364 = vmax.f32 %v268, 0.0
    %v365 = vmax.f32 %v271, 0.0
    %v366 = vmax.f32 %v276, 0.0
    %v367 = vmax.f32 %v279, 0.0
    %v368 = vmax.f32 %v284, 0.0
    %v369 = vmax.f32 %v287, 0.0
    %v370 = vmax.f32 %v292, 0.0
    %v371 = vmax.f32 %v295, 0.0
    %v372 = vmax.f32 %v300, 0.0
    %v373 = vmax.f32 %v303, 0.0
    %v374 = vmax.f32 %v308, 0.0
    %v375 = vmax.f32 %v311, 0.0
    %v376 = vmax.f32 %v316, 0.0
    %v377 = vmax.f32 %v319, 0.0
    %v378 = vmax.f32 %v324, 0.0
    %v379 = vmax.f32 %v327, 0.0
    %v380 = vmax.f32 %v332, 0.0
    %v381 = vmax.f32 %v335, 0.0
    %v382 = vmax.f32 %v340, 0.0
    %v383 = vmax.f32 %v343, 0.0
    %v384 = vmax.f32 %v348, 0.0
    %v385 = vmax.f32 %v351, 0.0
    %v386 = vpack.c.bf16 %v355, %v354
    %v387 = vpack.c.bf16 %v357, %v356
    %v388 = vpack.c.bf16 %v359, %v358
    %v389 = vpack.c.bf16 %v361, %v360
    %v390 = vpack.c.bf16 %v363, %v362
    %v391 = vpack.c.bf16 %v365, %v364
    %v392 = vpack.c.bf16 %v367, %v366
    %v393 = vpack.c.bf16 %v369, %v368
    %v394 = vpack.c.bf16 %v371, %v370
    %v395 = vpack.c.bf16 %v373, %v372
    %v396 = vpack.c.bf16 %v375, %v374
    %v397 = vpack.c.bf16 %v377, %v376
    %v398 = vpack.c.bf16 %v379, %v378
    %v399 = vpack.c.bf16 %v381, %v380
    %v400 = vpack.c.bf16 %v383, %v382
    %v401 = vpack.c.bf16 %v385, %v384
    %v402 = vld [vmem:[%s2] sm:$0xf]
    %v403 = vld [vmem:[%s2 + $0x4] sm:$0xf]
    %v404 = vld [vmem:[%s2 + $0x8] sm:$0xf]
    %v405 = vld [vmem:[%s2 + $0xc] sm:$0xf]
    %v406 = vld [vmem:[%s2 + $0x10] sm:$0xf]
    %v407 = vld [vmem:[%s2 + $0x14] sm:$0xf]
    %v408 = vld [vmem:[%s2 + $0x18] sm:$0xf]
    %v409 = vld [vmem:[%s2 + $0x1c] sm:$0xf]
    %v410 = vld [vmem:[%s2 + $0x20] sm:$0xf]
    %v411 = vld [vmem:[%s2 + $0x24] sm:$0xf]
    %v412 = vld [vmem:[%s2 + $0x28] sm:$0xf]
    %v413 = vld [vmem:[%s2 + $0x2c] sm:$0xf]
    %v414 = vld [vmem:[%s2 + $0x30] sm:$0xf]
    %v415 = vld [vmem:[%s2 + $0x34] sm:$0xf]
    %v416 = vld [vmem:[%s2 + $0x38] sm:$0xf]
    %v417 = vld [vmem:[%s2 + $0x3c] sm:$0xf]
    %v419 = vlaneseq
    %v420 = vshrl.u32 %v419, 7
    %v421 = vsub.s32 0, %v420
    %v422 = vrot.slane %v21, %v421
    %v440 = vunpack.c.l.b16 %v402
    %v441 = vunpack.c.l.b16 %v403
    %v442 = vunpack.c.l.b16 %v404
    %v443 = vunpack.c.l.b16 %v405
    %v444 = vunpack.c.l.b16 %v406
    %v445 = vunpack.c.l.b16 %v407
    %v446 = vunpack.c.l.b16 %v408
    %v447 = vunpack.c.l.b16 %v409
    %v448 = vunpack.c.l.b16 %v410
    %v449 = vunpack.c.l.b16 %v411
    %v450 = vunpack.c.l.b16 %v412
    %v451 = vunpack.c.l.b16 %v413
    %v452 = vunpack.c.l.b16 %v414
    %v453 = vunpack.c.l.b16 %v415
    %v454 = vunpack.c.l.b16 %v416
    %v455 = vunpack.c.l.b16 %v417
    %v456 = vpack.c.b16 %v441, %v440
    %v457 = vpack.c.b16 %v443, %v442
    %v458 = vpack.c.b16 %v445, %v444
    %v459 = vpack.c.b16 %v447, %v446
    %v460 = vpack.c.b16 %v449, %v448
    %v461 = vpack.c.b16 %v451, %v450
    %v462 = vpack.c.b16 %v453, %v452
    %v463 = vpack.c.b16 %v455, %v454
    %472 = vmatprep.subr.bf16.mxu0 0
    %473 = vmatpush1.bf16.msra.mxu0 %v456
    %474 = vmatprep.subr.bf16.mxu0 0
    %475 = vmatpush1.bf16.msra.mxu0 %v457
    %476 = vmatprep.subr.bf16.mxu0 0
    %477 = vmatpush1.bf16.msra.mxu0 %v458
    %478 = vmatprep.subr.bf16.mxu0 0
    %479 = vmatpush1.bf16.msra.mxu0 %v459
    %480 = vmatprep.subr.bf16.mxu0 0
    %481 = vmatpush1.bf16.msra.mxu0 %v460
    %482 = vmatprep.subr.bf16.mxu0 0
    %483 = vmatpush1.bf16.msra.mxu0 %v461
    %484 = vmatprep.subr.bf16.mxu0 0
    %485 = vmatpush1.bf16.msra.mxu0 %v462
    %486 = vmatprep.subr.bf16.mxu0 0
    %487 = vmatpush1.bf16.msra.mxu0 %v463
    %488 = vmatprep.subr.bf16.mxu0 0
    %489 = vmatpush1.bf16.msra.mxu0 0
    %490 = vmatprep.subr.bf16.mxu0 0
    %491 = vmatpush1.bf16.msra.mxu0 0
    %492 = vmatprep.subr.bf16.mxu0 0
    %493 = vmatpush1.bf16.msra.mxu0 0
    %494 = vmatprep.subr.bf16.mxu0 0
    %495 = vmatpush1.bf16.msra.mxu0 0
    %496 = vmatprep.subr.bf16.mxu0 0
    %497 = vmatpush1.bf16.msra.mxu0 0
    %498 = vmatprep.subr.bf16.mxu0 0
    %499 = vmatpush1.bf16.msra.mxu0 0
    %500 = vmatprep.subr.bf16.mxu0 0
    %501 = vmatpush1.bf16.msra.mxu0 0
    %502 = vmatprep.subr.bf16.mxu0 0
    %503 = vmatpush1.bf16.msra.mxu0 0
    %504 = vmatprep.mubr.bf16.mxu0 0
    %505 = vmatmul.mubr.bf16.gmra.mrb[0].mxu0 %v386
    %v506 = vpop.f32.mrb[0].mxu0
    %v507 = vadd.f32 %v422, %v506
    %v508 = vpop.f32.mrb[0].mxu0
    %v509 = vpop.f32.mrb[0].mxu0
    %v510 = vadd.f32 %v422, %v509
    %v511 = vpop.f32.mrb[0].mxu0
    %512 = vmatprep.mubr.bf16.mxu0 0
    %513 = vmatmul.mubr.bf16.gmra.mrb[0].mxu0 %v387
    %v514 = vpop.f32.mrb[0].mxu0
    %v515 = vadd.f32 %v422, %v514
    %v516 = vpop.f32.mrb[0].mxu0
    %v517 = vpop.f32.mrb[0].mxu0
    %v518 = vadd.f32 %v422, %v517
    %v519 = vpop.f32.mrb[0].mxu0
    %520 = vmatprep.mubr.bf16.mxu0 0
    %521 = vmatmul.mubr.bf16.gmra.mrb[0].mxu0 %v388
    %v522 = vpop.f32.mrb[0].mxu0
    %v523 = vadd.f32 %v422, %v522
    %v524 = vpop.f32.mrb[0].mxu0
    %v525 = vpop.f32.mrb[0].mxu0
    %v526 = vadd.f32 %v422, %v525
    %v527 = vpop.f32.mrb[0].mxu0
    %528 = vmatprep.mubr.bf16.mxu0 0
    %529 = vmatmul.mubr.bf16.gmra.mrb[0].mxu0 %v389
    %v530 = vpop.f32.mrb[0].mxu0
    %v531 = vadd.f32 %v422, %v530
    %v532 = vpop.f32.mrb[0].mxu0
    %v533 = vpop.f32.mrb[0].mxu0
    %v534 = vadd.f32 %v422, %v533
    %v535 = vpop.f32.mrb[0].mxu0
    %536 = vmatprep.mubr.bf16.mxu0 0
    %537 = vmatmul.mubr.bf16.gmra.mrb[0].mxu0 %v390
    %v538 = vpop.f32.mrb[0].mxu0
    %v539 = vadd.f32 %v422, %v538
    %v540 = vpop.f32.mrb[0].mxu0
    %v541 = vpop.f32.mrb[0].mxu0
    %v542 = vadd.f32 %v422, %v541
    %v543 = vpop.f32.mrb[0].mxu0
    %544 = vmatprep.mubr.bf16.mxu0 0
    %545 = vmatmul.mubr.bf16.gmra.mrb[0].mxu0 %v391
    %v546 = vpop.f32.mrb[0].mxu0
    %v547 = vadd.f32 %v422, %v546
    %v548 = vpop.f32.mrb[0].mxu0
    %v549 = vpop.f32.mrb[0].mxu0
    %v550 = vadd.f32 %v422, %v549
    %v551 = vpop.f32.mrb[0].mxu0
    %552 = vmatprep.mubr.bf16.mxu0 0
    %553 = vmatmul.mubr.bf16.gmra.mrb[0].mxu0 %v392
    %v554 = vpop.f32.mrb[0].mxu0
    %v555 = vadd.f32 %v422, %v554
    %v556 = vpop.f32.mrb[0].mxu0
    %v557 = vpop.f32.mrb[0].mxu0
    %v558 = vadd.f32 %v422, %v557
    %v559 = vpop.f32.mrb[0].mxu0
    %560 = vmatprep.mubr.bf16.mxu0 0
    %561 = vmatmul.mubr.bf16.gmra.mrb[0].mxu0 %v393
    %v562 = vpop.f32.mrb[0].mxu0
    %v563 = vadd.f32 %v422, %v562
    %v564 = vpop.f32.mrb[0].mxu0
    %v565 = vpop.f32.mrb[0].mxu0
    %v566 = vadd.f32 %v422, %v565
    %v567 = vpop.f32.mrb[0].mxu0
    %568 = vmatprep.mubr.bf16.mxu0 0
    %569 = vmatmul.mubr.bf16.gmra.mrb[0].mxu0 %v394
    %v570 = vpop.f32.mrb[0].mxu0
    %v571 = vadd.f32 %v422, %v570
    %v572 = vpop.f32.mrb[0].mxu0
    %v573 = vpop.f32.mrb[0].mxu0
    %v574 = vadd.f32 %v422, %v573
    %v575 = vpop.f32.mrb[0].mxu0
    %576 = vmatprep.mubr.bf16.mxu0 0
    %577 = vmatmul.mubr.bf16.gmra.mrb[0].mxu0 %v395
    %v578 = vpop.f32.mrb[0].mxu0
    %v579 = vadd.f32 %v422, %v578
    %v580 = vpop.f32.mrb[0].mxu0
    %v581 = vpop.f32.mrb[0].mxu0
    %v582 = vadd.f32 %v422, %v581
    %v583 = vpop.f32.mrb[0].mxu0
    %584 = vmatprep.mubr.bf16.mxu0 0
    %585 = vmatmul.mubr.bf16.gmra.mrb[0].mxu0 %v396
    %v586 = vpop.f32.mrb[0].mxu0
    %v587 = vadd.f32 %v422, %v586
    %v588 = vpop.f32.mrb[0].mxu0
    %v589 = vpop.f32.mrb[0].mxu0
    %v590 = vadd.f32 %v422, %v589
    %v591 = vpop.f32.mrb[0].mxu0
    %592 = vmatprep.mubr.bf16.mxu0 0
    %593 = vmatmul.mubr.bf16.gmra.mrb[0].mxu0 %v397
    %v594 = vpop.f32.mrb[0].mxu0
    %v595 = vadd.f32 %v422, %v594
    %v596 = vpop.f32.mrb[0].mxu0
    %v597 = vpop.f32.mrb[0].mxu0
    %v598 = vadd.f32 %v422, %v597
    %v599 = vpop.f32.mrb[0].mxu0
    %600 = vmatprep.mubr.bf16.mxu0 0
    %601 = vmatmul.mubr.bf16.gmra.mrb[0].mxu0 %v398
    %v602 = vpop.f32.mrb[0].mxu0
    %v603 = vadd.f32 %v422, %v602
    %v604 = vpop.f32.mrb[0].mxu0
    %v605 = vpop.f32.mrb[0].mxu0
    %v606 = vadd.f32 %v422, %v605
    %v607 = vpop.f32.mrb[0].mxu0
    %608 = vmatprep.mubr.bf16.mxu0 0
    %609 = vmatmul.mubr.bf16.gmra.mrb[0].mxu0 %v399
    %v610 = vpop.f32.mrb[0].mxu0
    %v611 = vadd.f32 %v422, %v610
    %v612 = vpop.f32.mrb[0].mxu0
    %v613 = vpop.f32.mrb[0].mxu0
    %v614 = vadd.f32 %v422, %v613
    %v615 = vpop.f32.mrb[0].mxu0
    %616 = vmatprep.mubr.bf16.mxu0 0
    %617 = vmatmul.mubr.bf16.gmra.mrb[0].mxu0 %v400
    %v618 = vpop.f32.mrb[0].mxu0
    %v619 = vadd.f32 %v422, %v618
    %v620 = vpop.f32.mrb[0].mxu0
    %v621 = vpop.f32.mrb[0].mxu0
    %v622 = vadd.f32 %v422, %v621
    %v623 = vpop.f32.mrb[0].mxu0
    %624 = vmatprep.mubr.bf16.mxu0 0
    %625 = vmatmul.mubr.bf16.gmra.mrb[0].mxu0 %v401
    %v626 = vpop.f32.mrb[0].mxu0
    %v627 = vadd.f32 %v422, %v626
    %v628 = vpop.f32.mrb[0].mxu0
    %v629 = vpop.f32.mrb[0].mxu0
    %v630 = vadd.f32 %v422, %v629
    %v631 = vpop.f32.mrb[0].mxu0
    %632 = vdwg.mxu0
    %v633 = vmax.f32 %v507, 0.0
    %v634 = vmax.f32 %v510, 0.0
    %v635 = vmax.f32 %v515, 0.0
    %v636 = vmax.f32 %v518, 0.0
    %v637 = vmax.f32 %v523, 0.0
    %v638 = vmax.f32 %v526, 0.0
    %v639 = vmax.f32 %v531, 0.0
    %v640 = vmax.f32 %v534, 0.0
    %v641 = vmax.f32 %v539, 0.0
    %v642 = vmax.f32 %v542, 0.0
    %v643 = vmax.f32 %v547, 0.0
    %v644 = vmax.f32 %v550, 0.0
    %v645 = vmax.f32 %v555, 0.0
    %v646 = vmax.f32 %v558, 0.0
    %v647 = vmax.f32 %v563, 0.0
    %v648 = vmax.f32 %v566, 0.0
    %v649 = vmax.f32 %v571, 0.0
    %v650 = vmax.f32 %v574, 0.0
    %v651 = vmax.f32 %v579, 0.0
    %v652 = vmax.f32 %v582, 0.0
    %v653 = vmax.f32 %v587, 0.0
    %v654 = vmax.f32 %v590, 0.0
    %v655 = vmax.f32 %v595, 0.0
    %v656 = vmax.f32 %v598, 0.0
    %v657 = vmax.f32 %v603, 0.0
    %v658 = vmax.f32 %v606, 0.0
    %v659 = vmax.f32 %v611, 0.0
    %v660 = vmax.f32 %v614, 0.0
    %v661 = vmax.f32 %v619, 0.0
    %v662 = vmax.f32 %v622, 0.0
    %v663 = vmax.f32 %v627, 0.0
    %v664 = vmax.f32 %v630, 0.0
    %v665 = vmax.f32 %v633, %v634
    %v666 = vrot.slane %v665, 4
    %v667 = vmax.f32 %v665, %v666
    %v668 = vrot.slane %v667, 2
    %v669 = vmax.f32 %v667, %v668
    %v670 = vrot.slane %v669, 1
    %v671 = vmax.f32 %v669, %v670
    %v672 = vmax.f32 %v635, %v636
    %v673 = vrot.slane %v672, 4
    %v674 = vmax.f32 %v672, %v673
    %v675 = vrot.slane %v674, 2
    %v676 = vmax.f32 %v674, %v675
    %v677 = vrot.slane %v676, 1
    %v678 = vmax.f32 %v676, %v677
    %v679 = vmax.f32 %v637, %v638
    %v680 = vrot.slane %v679, 4
    %v681 = vmax.f32 %v679, %v680
    %v682 = vrot.slane %v681, 2
    %v683 = vmax.f32 %v681, %v682
    %v684 = vrot.slane %v683, 1
    %v685 = vmax.f32 %v683, %v684
    %v686 = vmax.f32 %v639, %v640
    %v687 = vrot.slane %v686, 4
    %v688 = vmax.f32 %v686, %v687
    %v689 = vrot.slane %v688, 2
    %v690 = vmax.f32 %v688, %v689
    %v691 = vrot.slane %v690, 1
    %v692 = vmax.f32 %v690, %v691
    %v693 = vmax.f32 %v641, %v642
    %v694 = vrot.slane %v693, 4
    %v695 = vmax.f32 %v693, %v694
    %v696 = vrot.slane %v695, 2
    %v697 = vmax.f32 %v695, %v696
    %v698 = vrot.slane %v697, 1
    %v699 = vmax.f32 %v697, %v698
    %v700 = vmax.f32 %v643, %v644
    %v701 = vrot.slane %v700, 4
    %v702 = vmax.f32 %v700, %v701
    %v703 = vrot.slane %v702, 2
    %v704 = vmax.f32 %v702, %v703
    %v705 = vrot.slane %v704, 1
    %v706 = vmax.f32 %v704, %v705
    %v707 = vmax.f32 %v645, %v646
    %v708 = vrot.slane %v707, 4
    %v709 = vmax.f32 %v707, %v708
    %v710 = vrot.slane %v709, 2
    %v711 = vmax.f32 %v709, %v710
    %v712 = vrot.slane %v711, 1
    %v713 = vmax.f32 %v711, %v712
    %v714 = vmax.f32 %v647, %v648
    %v715 = vrot.slane %v714, 4
    %v716 = vmax.f32 %v714, %v715
    %v717 = vrot.slane %v716, 2
    %v718 = vmax.f32 %v716, %v717
    %v719 = vrot.slane %v718, 1
    %v720 = vmax.f32 %v718, %v719
    %v721 = vmax.f32 %v649, %v650
    %v722 = vrot.slane %v721, 4
    %v723 = vmax.f32 %v721, %v722
    %v724 = vrot.slane %v723, 2
    %v725 = vmax.f32 %v723, %v724
    %v726 = vrot.slane %v725, 1
    %v727 = vmax.f32 %v725, %v726
    %v728 = vmax.f32 %v651, %v652
    %v729 = vrot.slane %v728, 4
    %v730 = vmax.f32 %v728, %v729
    %v731 = vrot.slane %v730, 2
    %v732 = vmax.f32 %v730, %v731
    %v733 = vrot.slane %v732, 1
    %v734 = vmax.f32 %v732, %v733
    %v735 = vmax.f32 %v653, %v654
    %v736 = vrot.slane %v735, 4
    %v737 = vmax.f32 %v735, %v736
    %v738 = vrot.slane %v737, 2
    %v739 = vmax.f32 %v737, %v738
    %v740 = vrot.slane %v739, 1
    %v741 = vmax.f32 %v739, %v740
    %v742 = vmax.f32 %v655, %v656
    %v743 = vrot.slane %v742, 4
    %v744 = vmax.f32 %v742, %v743
    %v745 = vrot.slane %v744, 2
    %v746 = vmax.f32 %v744, %v745
    %v747 = vrot.slane %v746, 1
    %v748 = vmax.f32 %v746, %v747
    %v749 = vmax.f32 %v657, %v658
    %v750 = vrot.slane %v749, 4
    %v751 = vmax.f32 %v749, %v750
    %v752 = vrot.slane %v751, 2
    %v753 = vmax.f32 %v751, %v752
    %v754 = vrot.slane %v753, 1
    %v755 = vmax.f32 %v753, %v754
    %v756 = vmax.f32 %v659, %v660
    %v757 = vrot.slane %v756, 4
    %v758 = vmax.f32 %v756, %v757
    %v759 = vrot.slane %v758, 2
    %v760 = vmax.f32 %v758, %v759
    %v761 = vrot.slane %v760, 1
    %v762 = vmax.f32 %v760, %v761
    %v763 = vmax.f32 %v661, %v662
    %v764 = vrot.slane %v763, 4
    %v765 = vmax.f32 %v763, %v764
    %v766 = vrot.slane %v765, 2
    %v767 = vmax.f32 %v765, %v766
    %v768 = vrot.slane %v767, 1
    %v769 = vmax.f32 %v767, %v768
    %v770 = vmax.f32 %v663, %v664
    %v771 = vrot.slane %v770, 4
    %v772 = vmax.f32 %v770, %v771
    %v773 = vrot.slane %v772, 2
    %v774 = vmax.f32 %v772, %v773
    %v775 = vrot.slane %v774, 1
    %v776 = vmax.f32 %v774, %v775
    %vm793 = vcmask 1041409
    %v794 = vsel %vm793, %v678, %v671
    %vm795 = vcmask 1042434
    %v796 = vsel %vm795, %v685, %v794
    %vm797 = vcmask 1043459
    %v798 = vsel %vm797, %v692, %v796
    %vm799 = vcmask 1044484
    %v800 = vsel %vm799, %v699, %v798
    %vm801 = vcmask 1045509
    %v802 = vsel %vm801, %v706, %v800
    %vm803 = vcmask 1046534
    %v804 = vsel %vm803, %v713, %v802
    %vm805 = vcmask 1047559
    %v806 = vsel %vm805, %v720, %v804
    %v807 = vsel %vm793, %v734, %v727
    %v808 = vsel %vm795, %v741, %v807
    %v809 = vsel %vm797, %v748, %v808
    %v810 = vsel %vm799, %v755, %v809
    %v811 = vsel %vm801, %v762, %v810
    %v812 = vsel %vm803, %v769, %v811
    %v813 = vsel %vm805, %v776, %v812
    %816 = vst [vmem:[#allocation2] sm:$0xff] %v806
    %817 = vst [vmem:[#allocation2 + $0x8] sm:$0xff] %v813
    // Predicated region
    $region18: #{tpu_custom_call.1} parent=1 // pred_check
      _
    $region19: #{tpu_custom_call.1} parent=1 // pred_check_branch
      %819 = sbr.rel (0) target = $region21
    $region20: #{tpu_custom_call.1} parent=1 // pred_region
      %s821 = ssub.s32 256, 256
      %822 = vsyncadd [#allocation3], %s821
      %s823 = sshll.u32 [#allocation2], 4
      %s824 = int_to_ptr.vmem [resolvable:$true] %s823
      %829 = dma.vmem_to_hbm [thread:$0]  %s824, 256, %s4, [#allocation3], 128, 128, 8
    $region21: #{tpu_custom_call.1} parent=1 // pred_fallthru
      _
    // Predicated region
    $region22: #{tpu_custom_call.1} parent=1 // pred_check
      _
    $region23: #{tpu_custom_call.1} parent=1 // pred_check_branch
      %831 = sbr.rel (0) target = $region25
    $region24: #{tpu_custom_call.1} parent=1 // pred_region
      %832 = dma.done [#allocation3], 256
    $region25: #{tpu_custom_call.1} parent=1 // pred_fallthru
      _
    %833 = vsyncpa [#allocation3], 1

</llo_original>
